<compile_context>
chip_gen: v7x
topology: tpu7x:2x2x1
jax: 0.10.0
libtpu: 0.0.40
codegen_flags: <defaults>
</compile_context>

<pallas_src>
import functools

import jax
import jax.numpy as jnp
from jax.experimental import pallas as pl
from jax.experimental.pallas import tpu as pltpu


# --------------------------------------------------------------------------
# Pallas kernels
# --------------------------------------------------------------------------
def _dense_kernel(x_ref, w_ref, b_ref, o_ref, *, activation):
    """o = act(x @ w + b); fused bias (+ activation) epilogue."""
    acc = jnp.dot(x_ref[...], w_ref[...], preferred_element_type=jnp.float32)
    acc = acc + b_ref[...]
    if activation == "gelu":
        acc = jax.nn.gelu(acc, approximate=True)
    o_ref[...] = acc.astype(o_ref.dtype)


def _dense_residual_ln_kernel(x_ref, w_ref, b_ref, res_ref, g_ref, beta_ref,
                              o_ref):
    """o = LayerNorm(x @ w + b + res); fully fused projection epilogue."""
    acc = jnp.dot(x_ref[...], w_ref[...], preferred_element_type=jnp.float32)
    acc = acc + b_ref[...] + res_ref[...].astype(jnp.float32)
    mean = jnp.mean(acc, axis=-1, keepdims=True)
    cent = acc - mean
    var = jnp.mean(cent * cent, axis=-1, keepdims=True)
    inv = jax.lax.rsqrt(var + 1e-12)
    o_ref[...] = (cent * inv * g_ref[...] + beta_ref[...]).astype(o_ref.dtype)


def _ffn_kernel(x_ref, wi_ref, bi_ref, wf_ref, bf_ref, g_ref, beta_ref, o_ref):
    """o = LayerNorm(gelu(x @ wi + bi) @ wf + bf + x).

    Both matmuls fused in one kernel: the (tm, intermediate) activation lives
    only in VMEM / vregs and never round-trips HBM.
    """
    x = x_ref[...].astype(jnp.float32)
    h = jnp.dot(x, wi_ref[...], preferred_element_type=jnp.float32)
    h = jax.nn.gelu(h + bi_ref[...], approximate=True)
    acc = jnp.dot(h, wf_ref[...], preferred_element_type=jnp.float32)
    acc = acc + bf_ref[...] + x
    mean = jnp.mean(acc, axis=-1, keepdims=True)
    cent = acc - mean
    var = jnp.mean(cent * cent, axis=-1, keepdims=True)
    inv = jax.lax.rsqrt(var + 1e-12)
    o_ref[...] = (cent * inv * g_ref[...] + beta_ref[...]).astype(o_ref.dtype)


def _layernorm_kernel(x_ref, g_ref, b_ref, o_ref):
    x = x_ref[...].astype(jnp.float32)
    mean = jnp.mean(x, axis=-1, keepdims=True)
    cent = x - mean
    var = jnp.mean(cent * cent, axis=-1, keepdims=True)
    inv = jax.lax.rsqrt(var + 1e-12)
    o_ref[...] = (cent * inv * g_ref[...] + b_ref[...]).astype(o_ref.dtype)


def _mha_kernel(qkv_ref, mask_ref, o_ref, *, num_heads, head_dim):
    """Masked multi-head self-attention for one batch element (grid over B).

    Takes the fused QKV activation (S, 3H); the Q/K/V splits are lane-aligned
    static slices (multiples of 128).
    """
    H = num_heads * head_dim
    qkv = qkv_ref[0].astype(jnp.float32)       # (S, 3H)
    q = qkv[:, 0:H]
    k = qkv[:, H:2 * H]
    v = qkv[:, 2 * H:3 * H]
    # additive mask over the key axis, (1, S) broadcast over query rows
    bias = (1.0 - mask_ref[0].astype(jnp.float32)) * -1e9
    scale = float(head_dim) ** -0.5

    outs = []
    for h in range(num_heads):                 # static unroll, heads are few
        sl = slice(h * head_dim, (h + 1) * head_dim)
        qh, kh, vh = q[:, sl], k[:, sl], v[:, sl]
        s = jax.lax.dot_general(qh, kh, (((1,), (1,)), ((), ())),
                                preferred_element_type=jnp.float32)
        s = s * scale + bias                   # (S, S)
        m = jnp.max(s, axis=-1, keepdims=True)
        p = jnp.exp(s - m)
        p = p / jnp.sum(p, axis=-1, keepdims=True)
        outs.append(jnp.dot(p, vh, preferred_element_type=jnp.float32))
    o_ref[0] = jnp.concatenate(outs, axis=-1).astype(o_ref.dtype)


# --------------------------------------------------------------------------
# pallas_call wrappers
# --------------------------------------------------------------------------
def _choose_tile(n, cap=256):
    """Largest token tile (multiple of 8, <= cap) that divides n."""
    if n <= cap:
        return n
    for t in range(cap, 7, -8):
        if n % t == 0:
            return t
    return n


def dense(x, w, b, activation=None):
    N, K = x.shape
    M = w.shape[1]
    tm = _choose_tile(N)
    return pl.pallas_call(
        functools.partial(_dense_kernel, activation=activation),
        out_shape=jax.ShapeDtypeStruct((N, M), jnp.float32),
        grid_spec=pltpu.PrefetchScalarGridSpec(
            num_scalar_prefetch=0, grid=(N // tm,),
            in_specs=[pl.BlockSpec((tm, K), lambda i: (i, 0)),
                      pl.BlockSpec((K, M), lambda i: (0, 0)),
                      pl.BlockSpec((1, M), lambda i: (0, 0))],
            out_specs=pl.BlockSpec((tm, M), lambda i: (i, 0))),
        compiler_params=pltpu.CompilerParams(
            dimension_semantics=("parallel",)),
    )(x, w, b)


def dense_residual_ln(x, w, b, res, gamma, beta):
    N, K = x.shape
    M = w.shape[1]
    tm = _choose_tile(N)
    return pl.pallas_call(
        _dense_residual_ln_kernel,
        out_shape=jax.ShapeDtypeStruct((N, M), jnp.float32),
        grid_spec=pltpu.PrefetchScalarGridSpec(
            num_scalar_prefetch=0, grid=(N // tm,),
            in_specs=[pl.BlockSpec((tm, K), lambda i: (i, 0)),
                      pl.BlockSpec((K, M), lambda i: (0, 0)),
                      pl.BlockSpec((1, M), lambda i: (0, 0)),
                      pl.BlockSpec((tm, M), lambda i: (i, 0)),
                      pl.BlockSpec((1, M), lambda i: (0, 0)),
                      pl.BlockSpec((1, M), lambda i: (0, 0))],
            out_specs=pl.BlockSpec((tm, M), lambda i: (i, 0))),
        compiler_params=pltpu.CompilerParams(
            dimension_semantics=("parallel",)),
    )(x, w, b, res, gamma, beta)


def ffn_block(x, wi, bi, wf, bf, gamma, beta):
    N, H = x.shape
    I = wi.shape[1]
    tm = _choose_tile(N)
    return pl.pallas_call(
        _ffn_kernel,
        out_shape=jax.ShapeDtypeStruct((N, H), jnp.float32),
        grid_spec=pltpu.PrefetchScalarGridSpec(
            num_scalar_prefetch=0, grid=(N // tm,),
            in_specs=[pl.BlockSpec((tm, H), lambda i: (i, 0)),
                      pl.BlockSpec((H, I), lambda i: (0, 0)),
                      pl.BlockSpec((1, I), lambda i: (0, 0)),
                      pl.BlockSpec((I, H), lambda i: (0, 0)),
                      pl.BlockSpec((1, H), lambda i: (0, 0)),
                      pl.BlockSpec((1, H), lambda i: (0, 0)),
                      pl.BlockSpec((1, H), lambda i: (0, 0))],
            out_specs=pl.BlockSpec((tm, H), lambda i: (i, 0))),
        compiler_params=pltpu.CompilerParams(
            dimension_semantics=("parallel",)),
    )(x, wi, bi, wf, bf, gamma, beta)


def layernorm(x, gamma, beta):
    N, H = x.shape
    tm = _choose_tile(N)
    return pl.pallas_call(
        _layernorm_kernel,
        out_shape=jax.ShapeDtypeStruct((N, H), jnp.float32),
        grid_spec=pltpu.PrefetchScalarGridSpec(
            num_scalar_prefetch=0, grid=(N // tm,),
            in_specs=[pl.BlockSpec((tm, H), lambda i: (i, 0)),
                      pl.BlockSpec((1, H), lambda i: (0, 0)),
                      pl.BlockSpec((1, H), lambda i: (0, 0))],
            out_specs=pl.BlockSpec((tm, H), lambda i: (i, 0))),
        compiler_params=pltpu.CompilerParams(
            dimension_semantics=("parallel",)),
    )(x, gamma, beta)


def multi_head_attention(qkv, attn_mask, num_heads):
    """qkv: (B, S, 3H) fused projection; attn_mask: (B, S) of 0/1."""
    B, S, H3 = qkv.shape
    H = H3 // 3
    head_dim = H // num_heads
    mask3 = attn_mask.astype(jnp.int32).reshape(B, 1, S)
    return pl.pallas_call(
        functools.partial(_mha_kernel, num_heads=num_heads, head_dim=head_dim),
        out_shape=jax.ShapeDtypeStruct((B, S, H), jnp.float32),
        grid_spec=pltpu.PrefetchScalarGridSpec(
            num_scalar_prefetch=0, grid=(B,),
            in_specs=[pl.BlockSpec((1, S, H3), lambda b: (b, 0, 0)),
                      pl.BlockSpec((1, 1, S), lambda b: (b, 0, 0))],
            out_specs=pl.BlockSpec((1, S, H), lambda b: (b, 0, 0))),
        compiler_params=pltpu.CompilerParams(
            dimension_semantics=("parallel",)),
    )(qkv, mask3)


# --------------------------------------------------------------------------
# BERTCell equivalent
# --------------------------------------------------------------------------
class BERTCellPallas:
    """forward(input_ids, attn_mask) -> sequence_output (B, S, H)."""

    def __init__(self, key, *, vocab_size=128, hidden_size=128, num_layers=2,
                 num_heads=2, intermediate_size=512, max_position=32):
        # TODO(synk): AutoModel.from_pretrained(model_path) cannot be loaded
        # (no file / network access); same architecture, random weights.
        H, I = hidden_size, intermediate_size
        self.hidden_size, self.num_heads = H, num_heads

        def init(k, shape, scale=0.02):
            return scale * jax.random.normal(k, shape, jnp.float32)

        keys = jax.random.split(key, 4 + num_layers)
        self.word_emb = init(keys[0], (vocab_size, H))
        self.pos_emb = init(keys[1], (max_position, H))
        self.type_emb = init(keys[2], (2, H))
        ke = jax.random.split(keys[3], 2)
        self.emb_ln_g = 1.0 + init(ke[0], (1, H))
        self.emb_ln_b = init(ke[1], (1, H))

        self.layers = []
        for li in range(num_layers):
            ks = jax.random.split(keys[4 + li], 10)
            self.layers.append(dict(
                # fused QKV projection: (H, 3H) / (1, 3H)
                wqkv=init(ks[0], (H, 3 * H)), bqkv=init(ks[1], (1, 3 * H)),
                wo=init(ks[2], (H, H)), bo=init(ks[3], (1, H)),
                ln1_g=1.0 + init(ks[4], (1, H)), ln1_b=init(ks[5], (1, H)),
                wi=init(ks[6], (H, I)), bi=init(ks[7], (1, I)),
                wf=init(ks[8], (I, H)), bf=init(ks[9], (1, H)),
                ln2_g=jnp.ones((1, H), jnp.float32),
                ln2_b=jnp.zeros((1, H), jnp.float32),
            ))

    def __call__(self, input_ids, attn_mask):
        B, S = input_ids.shape
        H = self.hidden_size
        # TODO(synk): embedding row gather (data-dependent) stays in plain JAX.
        emb = (jnp.take(self.word_emb, input_ids, axis=0)
               + self.pos_emb[None, :S, :]
               + self.type_emb[0][None, None, :])
        x = layernorm(emb.reshape(B * S, H), self.emb_ln_g, self.emb_ln_b)

        for p in self.layers:
            qkv = dense(x, p["wqkv"], p["bqkv"])              # (B*S, 3H)
            ctx = multi_head_attention(qkv.reshape(B, S, 3 * H), attn_mask,
                                       self.num_heads)        # (B, S, H)
            x = dense_residual_ln(ctx.reshape(B * S, H), p["wo"], p["bo"],
                                  x, p["ln1_g"], p["ln1_b"])
            x = ffn_block(x, p["wi"], p["bi"], p["wf"], p["bf"],
                          p["ln2_g"], p["ln2_b"])
        return x.reshape(B, S, H)            # sequence_output (dropout = eval)


# --------------------------------------------------------------------------
# Pure-JAX reference for verification
# --------------------------------------------------------------------------
def _ref_forward(cell, input_ids, attn_mask):
    B, S = input_ids.shape
    H, nh = cell.hidden_size, cell.num_heads
    hd = H // nh

    def ln(x, g, b):
        mean = jnp.mean(x, -1, keepdims=True)
        var = jnp.mean((x - mean) ** 2, -1, keepdims=True)
        return (x - mean) * jax.lax.rsqrt(var + 1e-12) * g + b

    emb = (jnp.take(cell.word_emb, input_ids, axis=0)
           + cell.pos_emb[None, :S, :] + cell.type_emb[0][None, None, :])
    x = ln(emb.reshape(B * S, H), cell.emb_ln_g, cell.emb_ln_b)
    bias = (1.0 - attn_mask.astype(jnp.float32))[:, None, None, :] * -1e9

    for p in cell.layers:
        qkv = x @ p["wqkv"] + p["bqkv"]
        q = qkv[:, 0:H].reshape(B, S, nh, hd).transpose(0, 2, 1, 3)
        k = qkv[:, H:2 * H].reshape(B, S, nh, hd).transpose(0, 2, 1, 3)
        v = qkv[:, 2 * H:].reshape(B, S, nh, hd).transpose(0, 2, 1, 3)
        s = jnp.einsum("bhqd,bhkd->bhqk", q, k) / (hd ** 0.5) + bias
        a = jax.nn.softmax(s, axis=-1)
        ctx = jnp.einsum("bhqk,bhkd->bhqd", a, v).transpose(0, 2, 1, 3)
        x = ln(ctx.reshape(B * S, H) @ p["wo"] + p["bo"] + x,
               p["ln1_g"], p["ln1_b"])
        inter = jax.nn.gelu(x @ p["wi"] + p["bi"], approximate=True)
        x = ln(inter @ p["wf"] + p["bf"] + x, p["ln2_g"], p["ln2_b"])
    return x.reshape(B, S, H)


# --------------------------------------------------------------------------
if __name__ == "__main__":
    key = jax.random.PRNGKey(0)
    B, S, H = 2, 8, 128
    k_ids, k_model = jax.random.split(key)

    input_ids = jax.random.randint(k_ids, (B, S), 0, 128, jnp.int32)
    lengths = jnp.array([S, 5], jnp.int32)
    attn_mask = (jnp.arange(S)[None, :] < lengths[:, None]).astype(jnp.int32)

    cell = BERTCellPallas(k_model, vocab_size=128, hidden_size=H,
                          num_layers=2, num_heads=2, intermediate_size=512,
                          max_position=32)

    out = cell(input_ids, attn_mask)
    jax.block_until_ready(out)

    ref = _ref_forward(cell, input_ids, attn_mask)
    assert out.shape == (B, S, H), out.shape
    max_err = float(jnp.max(jnp.abs(out - ref)))
    assert jnp.allclose(out, ref, rtol=5e-2, atol=5e-2), max_err

    print("KERNEL_OK")
</pallas_src>

<mosaic_0001>
module attributes {stable_mosaic.version = 11 : i64} {
  func.func @_layernorm_kernel(%arg0: i32, %arg1: memref<16x128xf32, #tpu.memory_space<vmem>>, %arg2: memref<1x128xf32, #tpu.memory_space<vmem>>, %arg3: memref<1x128xf32, #tpu.memory_space<vmem>>, %arg4: memref<16x128xf32, #tpu.memory_space<vmem>>) attributes {dimension_semantics = [#tpu.dimension_semantics<parallel>], iteration_bounds = array<i64: 1>, scalar_prefetch = 0 : i64, scratch_operands = 0 : i64, tpu.core_type = #tpu.core_type<tc>, window_params = [{transform_indices = @transform_0, window_bounds = array<i64: 16, 128>}, {pipeline_mode = #tpu.pipeline_mode<synchronous>, transform_indices = @transform_1, window_bounds = array<i64: 1, 128>}, {pipeline_mode = #tpu.pipeline_mode<synchronous>, transform_indices = @transform_2, window_bounds = array<i64: 1, 128>}, {transform_indices = @transform_3, window_bounds = array<i64: 16, 128>}]} {
    %c0 = arith.constant 0 : index
    %c0_0 = arith.constant 0 : index
    %0 = vector.load %arg1[%c0, %c0_0] : memref<16x128xf32, #tpu.memory_space<vmem>>, vector<16x128xf32>
    %cst = arith.constant dense<0.000000e+00> : vector<16xf32>
    %1 = vector.multi_reduction <add>, %0, %cst [1] : vector<16x128xf32> to vector<16xf32>
    %2 = vector.shape_cast %1 : vector<16xf32> to vector<16x1xf32>
    %cst_1 = arith.constant 1.280000e+02 : f32
    %3 = vector.broadcast %cst_1 : f32 to vector<16x1xf32>
    %4 = arith.divf %2, %3 : vector<16x1xf32>
    %5 = vector.broadcast %4 : vector<16x1xf32> to vector<16x128xf32>
    %6 = arith.subf %0, %5 : vector<16x128xf32>
    %7 = arith.mulf %6, %6 : vector<16x128xf32>
    %cst_2 = arith.constant dense<0.000000e+00> : vector<16xf32>
    %8 = vector.multi_reduction <add>, %7, %cst_2 [1] : vector<16x128xf32> to vector<16xf32>
    %9 = vector.shape_cast %8 : vector<16xf32> to vector<16x1xf32>
    %cst_3 = arith.constant 1.280000e+02 : f32
    %10 = vector.broadcast %cst_3 : f32 to vector<16x1xf32>
    %11 = arith.divf %9, %10 : vector<16x1xf32>
    %cst_4 = arith.constant 9.99999996E-13 : f32
    %12 = vector.broadcast %cst_4 : f32 to vector<16x1xf32>
    %13 = arith.addf %11, %12 : vector<16x1xf32>
    %14 = math.rsqrt %13 : vector<16x1xf32>
    %15 = vector.broadcast %14 : vector<16x1xf32> to vector<16x128xf32>
    %16 = arith.mulf %6, %15 : vector<16x128xf32>
    %c0_5 = arith.constant 0 : index
    %c0_6 = arith.constant 0 : index
    %17 = vector.load %arg2[%c0_5, %c0_6] : memref<1x128xf32, #tpu.memory_space<vmem>>, vector<1x128xf32>
    %18 = vector.broadcast %17 : vector<1x128xf32> to vector<16x128xf32>
    %19 = arith.mulf %16, %18 : vector<16x128xf32>
    %c0_7 = arith.constant 0 : index
    %c0_8 = arith.constant 0 : index
    %20 = vector.load %arg3[%c0_7, %c0_8] : memref<1x128xf32, #tpu.memory_space<vmem>>, vector<1x128xf32>
    %21 = vector.broadcast %20 : vector<1x128xf32> to vector<16x128xf32>
    %22 = arith.addf %19, %21 : vector<16x128xf32>
    %c0_9 = arith.constant 0 : index
    %c0_10 = arith.constant 0 : index
    %23 = vector.load %arg4[%c0_9, %c0_10] : memref<16x128xf32, #tpu.memory_space<vmem>>, vector<16x128xf32>
    tpu.vector_store %arg4[%c0_9, %c0_10], %22 {strides = array<i32>} : memref<16x128xf32, #tpu.memory_space<vmem>>, vector<16x128xf32>,
    return
  }
  func.func @transform_0(%arg0: i32) -> (i32, i32) {
    %c0_i32 = arith.constant 0 : i32
    %c0_i32_0 = arith.constant 0 : i32
    return %arg0, %c0_i32 : i32, i32
  }
  func.func @transform_1(%arg0: i32) -> (i32, i32) {
    %c0_i32 = arith.constant 0 : i32
    %c0_i32_0 = arith.constant 0 : i32
    %c0_i32_1 = arith.constant 0 : i32
    return %c0_i32, %c0_i32_0 : i32, i32
  }
  func.func @transform_2(%arg0: i32) -> (i32, i32) {
    %c0_i32 = arith.constant 0 : i32
    %c0_i32_0 = arith.constant 0 : i32
    %c0_i32_1 = arith.constant 0 : i32
    return %c0_i32, %c0_i32_0 : i32, i32
  }
  func.func @transform_3(%arg0: i32) -> (i32, i32) {
    %c0_i32 = arith.constant 0 : i32
    %c0_i32_0 = arith.constant 0 : i32
    return %arg0, %c0_i32 : i32, i32
  }
}

</mosaic_0001>

<llo_original>
// kernel: tpu_custom_call.1
$region0: #{tpu_custom_call.1}
  #allocation0 [shape = 'u32[]', space=smem, size = 0x4, offset = 0x4, fixed_abs, tag = 'smem constant byte address 0x4 - core index']
  #allocation1 [shape = 'u32[144,128]{1,0:T(1,128)}', space=vmem, size = 0x12000, scoped, tag = 'internal scratch']
  %s0 = inlined_call_operand.hbm [shape: f32[16,128], index: 0, kind: input, shape index: {}]
  %s1 = inlined_call_operand.vmem [shape: f32[1,128], index: 1, kind: input, shape index: {}]
  %s2 = inlined_call_operand.vmem [shape: f32[1,128], index: 2, kind: input, shape index: {}]
  %s3 = inlined_call_operand.hbm [shape: f32[16,128], index: 3, kind: output, shape index: {}]
  %s4 = sld [smem:[#allocation0]]
  $region26: #{tpu_custom_call.1} parent=0
    _
  %s6 = ssub.s32 1, %s4
  %s7 = scalar_select 0, %s6, %s4
  $region1: #{tpu_custom_call.1} parent=0
    #allocation2 [shape = 'u8[8192]{0}', space=vmem, size = 0x2000, scoped, tag = 'input window, operand 0, single buffered']
    #allocation3 [shape = 's32[1]{0}', space=sflag, size = 0x4, scoped, tag = 'scoped memory for tpu_custom_call.1']
    #allocation4 [shape = 's32[1]{0}', space=sflag, size = 0x4, scoped, tag = 'scoped memory for tpu_custom_call.1']
    #allocation5 [shape = 'u8[8192]{0}', space=vmem, size = 0x2000, scoped, tag = 'output window, operand 0, single buffered']
    %8 = vsyncpa [#allocation3], 0
    %9 = vsyncpa [#allocation4], 0
    // Predicated region
    $region2: #{tpu_custom_call.1} parent=1 // pred_check
      _
    $region3: #{tpu_custom_call.1} parent=1 // pred_check_branch
      %11 = sbr.rel (0) target = $region5
    $region4: #{tpu_custom_call.1} parent=1 // pred_region
      %s13 = ssub.s32 256, 256
      %14 = vsyncadd [#allocation3], %s13
      %s15 = sshll.u32 [#allocation2], 4
      %s16 = int_to_ptr.vmem [resolvable:$true] %s15
      %21 = dma.hbm_to_vmem [thread:$0]  %s0, 256, %s16, [#allocation3], 128, 128, 8
    $region5: #{tpu_custom_call.1} parent=1 // pred_fallthru
      _
    // Predicated region
    $region6: #{tpu_custom_call.1} parent=1 // pred_check
      _
    $region7: #{tpu_custom_call.1} parent=1 // pred_check_branch
      %23 = sbr.rel (0) target = $region9
    $region8: #{tpu_custom_call.1} parent=1 // pred_region
      _
    $region9: #{tpu_custom_call.1} parent=1 // pred_fallthru
      _
    // Predicated region
    $region10: #{tpu_custom_call.1} parent=1 // pred_check
      _
    $region11: #{tpu_custom_call.1} parent=1 // pred_check_branch
      %25 = sbr.rel (0) target = $region13
    $region12: #{tpu_custom_call.1} parent=1 // pred_region
      _
    $region13: #{tpu_custom_call.1} parent=1 // pred_fallthru
      _
    // Predicated region
    $region14: #{tpu_custom_call.1} parent=1 // pred_check
      _
    $region15: #{tpu_custom_call.1} parent=1 // pred_check_branch
      %27 = sbr.rel (0) target = $region17
    $region16: #{tpu_custom_call.1} parent=1 // pred_region
      %28 = dma.done [#allocation3], 256
    $region17: #{tpu_custom_call.1} parent=1 // pred_fallthru
      _
    %v29 = vld [vmem:[#allocation2] sm:$0xff]
    %v30 = vld [vmem:[#allocation2 + $0x8] sm:$0xff]
    %31 = vadd.xlane.f32.xlu0 %v29
    %v32 = vpop.xlane.xlu0 %31
    %33 = vadd.xlane.f32.xlu0 %v30
    %v34 = vpop.xlane.xlu0 %33
    %v35 = vrcp.pop 128.0
    %v36 = vmul.f32 %v32, %v35
    %v37 = vmul.f32 %v34, %v35
    %v38 = vsub.f32 %v29, %v36
    %v39 = vsub.f32 %v30, %v37
    %v40 = vmul.f32 %v38, %v38
    %v41 = vmul.f32 %v39, %v39
    %42 = vadd.xlane.f32.xlu0 %v40
    %v43 = vpop.xlane.xlu0 %42
    %44 = vadd.xlane.f32.xlu0 %v41
    %v45 = vpop.xlane.xlu0 %44
    %v46 = vmul.f32 %v43, %v35
    %v47 = vmul.f32 %v45, %v35
    %v48 = vadd.f32 %v46, 1e-12
    %v49 = vadd.f32 %v47, 1e-12
    %v50 = vrsqrt.pop %v48
    %v51 = vrsqrt.pop %v49
    %v52 = vmul.f32 %v38, %v50
    %v53 = vmul.f32 %v39, %v51
    %v54 = vld [vmem:[%s1] sm:$0x1]
    %v56 = vlaneseq
    %v57 = vshrl.u32 %v56, 7
    %v58 = vsub.s32 0, %v57
    %v59 = vrot.slane %v54, %v58
    %v61 = vmul.f32 %v52, %v59
    %v62 = vmul.f32 %v53, %v59
    %v63 = vld [vmem:[%s2] sm:$0x1]
    %v65 = vlaneseq
    %v66 = vshrl.u32 %v65, 7
    %v67 = vsub.s32 0, %v66
    %v68 = vrot.slane %v63, %v67
    %v70 = vadd.f32 %v61, %v68
    %v71 = vadd.f32 %v62, %v68
    %72 = vst [vmem:[#allocation5] sm:$0xff] %v70
    %73 = vst [vmem:[#allocation5 + $0x8] sm:$0xff] %v71
    // Predicated region
    $region18: #{tpu_custom_call.1} parent=1 // pred_check
      _
    $region19: #{tpu_custom_call.1} parent=1 // pred_check_branch
      %75 = sbr.rel (0) target = $region21
    $region20: #{tpu_custom_call.1} parent=1 // pred_region
      %s77 = ssub.s32 256, 256
      %78 = vsyncadd [#allocation4], %s77
      %s79 = sshll.u32 [#allocation5], 4
      %s80 = int_to_ptr.vmem [resolvable:$true] %s79
      %85 = dma.vmem_to_hbm [thread:$0]  %s80, 256, %s3, [#allocation4], 128, 128, 8
    $region21: #{tpu_custom_call.1} parent=1 // pred_fallthru
      _
    // Predicated region
    $region22: #{tpu_custom_call.1} parent=1 // pred_check
      _
    $region23: #{tpu_custom_call.1} parent=1 // pred_check_branch
      %87 = sbr.rel (0) target = $region25
    $region24: #{tpu_custom_call.1} parent=1 // pred_region
      %88 = dma.done [#allocation4], 256
    $region25: #{tpu_custom_call.1} parent=1 // pred_fallthru
      _
    %89 = vsyncpa [#allocation3], 1
    %90 = vsyncpa [#allocation4], 1

</llo_original>
